<compile_context>
chip_gen: v6e
topology: v6e:2x2x1
jax: 0.10.0
libtpu: 0.0.40
codegen_flags: <defaults>
</compile_context>

<pallas_src>
import jax
import jax.numpy as jnp
from jax.experimental import pallas as pl
from jax.experimental.pallas import tpu as pltpu


_VMEM_LIMIT_BYTES = 40 * 1024 * 1024    # > 16/32 MiB defaults, headroom under v7x 64 MiB
_BLOCK_BUDGET_BYTES = 8 * 1024 * 1024   # per logits buffer (x2 for double buffering)
_EPS_ONE_MINUS_PT = 1e-12               # guard for (1 - pt) ** gamma


def _cdiv(a, b):
    return (a + b - 1) // b


def _round_up(x, m):
    return ((x + m - 1) // m) * m


# ----------------------------------------------------------------------------
# Kernel 1: lane-dense transposed layout (C < 128).  Blocks:
#   logits (C, tn), target (1, tn), alpha/gamma (C, 1),
#   out (1, 1, tn)  -- resident per-parallel-block lane accumulator.
# ----------------------------------------------------------------------------
def _focal_loss_kernel_lane_dense(logits_ref, target_ref, alpha_ref, gamma_ref,
                                  out_ref):
    g = pl.program_id(1)

    @pl.when(g == 0)
    def _():
        out_ref[...] = jnp.zeros_like(out_ref)

    x = logits_ref[...].astype(jnp.float32)            # (C, tn)
    tgt = target_ref[...]                              # (1, tn) int32 (-1 == padding)

    # Stable softmax pieces; e = exp(x - m) reused for denominator AND target prob.
    m = jnp.max(x, axis=0, keepdims=True)              # (1, tn)
    xm = x - m                                         # (C, tn)
    e = jnp.exp(xm)                                    # (C, tn)   the one big EUP exp
    sum_e = jnp.sum(e, axis=0, keepdims=True)          # (1, tn)

    cls = jax.lax.broadcasted_iota(jnp.int32, x.shape, 0)     # class id on sublanes
    onehot = (cls == tgt).astype(jnp.float32)                 # (C, tn)

    e_t = jnp.sum(onehot * e, axis=0, keepdims=True)          # exp(x_t - m)
    xm_t = jnp.sum(onehot * xm, axis=0, keepdims=True)        # x_t - m

    ce = jnp.log(sum_e) - xm_t                                # (1, tn)
    pt = e_t * pl.reciprocal(sum_e, approx=True)              # (1, tn), EUP recip

    alpha = alpha_ref[...].astype(jnp.float32)                # (C, 1)
    gamma = gamma_ref[...].astype(jnp.float32)                # (C, 1)
    alpha_t = jnp.sum(onehot * alpha, axis=0, keepdims=True)  # (1, tn)
    gamma_t = jnp.sum(onehot * gamma, axis=0, keepdims=True)  # (1, tn)

    one_minus_pt = jnp.maximum(1.0 - pt, _EPS_ONE_MINUS_PT)
    loss = alpha_t * jnp.power(one_minus_pt, gamma_t) * ce    # (1, tn)
    loss = jnp.where(tgt >= 0, loss, 0.0)                     # zero out padded samples

    out_ref[...] += loss[None, :, :]                          # (1, 1, tn) vector accumulate


# ----------------------------------------------------------------------------
# Kernel 2: class-on-lanes layout (C >= 128).  Blocks:
#   logits (tm, C), target (tm, 1), ag (C, 2),
#   out (1, tm, 1)  -- resident per-parallel-block row accumulator.
# ----------------------------------------------------------------------------
def _focal_loss_kernel_class_lanes(logits_ref, target_ref, ag_ref, out_ref):
    g = pl.program_id(1)

    @pl.when(g == 0)
    def _():
        out_ref[...] = jnp.zeros_like(out_ref)

    x = logits_ref[...].astype(jnp.float32)            # (tm, C)
    tgt = target_ref[...]                              # (tm, 1) int32 (-1 == padding)

    m = jnp.max(x, axis=1, keepdims=True)              # (tm, 1)
    xm = x - m
    e = jnp.exp(xm)                                    # (tm, C)
    sum_e = jnp.sum(e, axis=1, keepdims=True)          # (tm, 1)

    cls = jax.lax.broadcasted_iota(jnp.int32, x.shape, 1)
    onehot = (cls == tgt).astype(jnp.float32)          # (tm, C)

    e_t = jnp.sum(onehot * e, axis=1, keepdims=True)
    xm_t = jnp.sum(onehot * xm, axis=1, keepdims=True)

    ce = jnp.log(sum_e) - xm_t                         # (tm, 1)
    pt = e_t * pl.reciprocal(sum_e, approx=True)       # (tm, 1)

    # alpha/gamma gather on the otherwise-idle MXU: onehot (tm,C) @ [alpha|gamma] (C,2).
    ag_t = jnp.dot(onehot, ag_ref[...],
                   preferred_element_type=jnp.float32,
                   precision=jax.lax.Precision.HIGHEST)       # (tm, 2)
    alpha_t = ag_t[:, 0:1]
    gamma_t = ag_t[:, 1:2]

    one_minus_pt = jnp.maximum(1.0 - pt, _EPS_ONE_MINUS_PT)
    loss = alpha_t * jnp.power(one_minus_pt, gamma_t) * ce    # (tm, 1)
    loss = jnp.where(tgt >= 0, loss, 0.0)

    out_ref[...] += loss[None, :, :]                          # (1, tm, 1) vector accumulate


# ----------------------------------------------------------------------------
# Wrappers
# ----------------------------------------------------------------------------
def _focal_loss_lane_dense(logits, target, alpha_vec, gamma_vec, *, num_parallel):
    N, C = logits.shape
    P = num_parallel

    # Lane tile (samples per block): multiple of 128, sized to the VMEM budget.
    tn_cap = max(128, min(8192, (_BLOCK_BUDGET_BYTES // (C * 4)) // 128 * 128))
    tn = min(tn_cap, _round_up(_cdiv(N, P), 128))
    G = _cdiv(N, P * tn)
    N_pad = P * G * tn

    # Layout plumbing only: lane-dense (C, N) view, samples -> lanes.
    x_t = jnp.transpose(logits.astype(jnp.float32))           # (C, N)
    tgt = target.astype(jnp.int32)
    if N_pad != N:
        x_t = jnp.pad(x_t, ((0, 0), (0, N_pad - N)))
        tgt = jnp.pad(tgt, (0, N_pad - N), constant_values=-1)
    tgt2 = tgt.reshape(1, N_pad)
    alpha2 = alpha_vec.astype(jnp.float32).reshape(C, 1)
    gamma2 = gamma_vec.astype(jnp.float32).reshape(C, 1)

    out = pl.pallas_call(
        _focal_loss_kernel_lane_dense,
        out_shape=jax.ShapeDtypeStruct((P, 1, tn), jnp.float32),
        grid_spec=pltpu.PrefetchScalarGridSpec(
            num_scalar_prefetch=0,
            grid=(P, G),
            in_specs=[
                # If xprof ever shows exposed DMA here, pipeline_mode=pl.Buffered(3)
                # is the next knob (sweep 2 vs 3).
                pl.BlockSpec((C, tn), lambda p, g: (0, p * G + g)),   # logits tile
                pl.BlockSpec((1, tn), lambda p, g: (0, p * G + g)),   # target tile
                pl.BlockSpec((C, 1), lambda p, g: (0, 0)),            # alpha (broadcast)
                pl.BlockSpec((C, 1), lambda p, g: (0, 0)),            # gamma (broadcast)
            ],
            out_specs=pl.BlockSpec((1, 1, tn), lambda p, g: (p, 0, 0)),
        ),
        compiler_params=pltpu.CompilerParams(
            dimension_semantics=("parallel", "arbitrary"),
            vmem_limit_bytes=_VMEM_LIMIT_BYTES),
    )(x_t, tgt2, alpha2, gamma2)
    # Tiny finalize in JAX: sum of per-parallel-block lane partial sums, then mean.
    return jnp.sum(out) / N


def _focal_loss_class_lanes(logits, target, alpha_vec, gamma_vec, *, num_parallel):
    N, C = logits.shape
    P = num_parallel

    # Row tile: multiple of 8 (sublane aligned), sized to the VMEM budget.
    tm_cap = max(8, min(1024, (_BLOCK_BUDGET_BYTES // (C * 4)) // 8 * 8))
    tm = min(tm_cap, _round_up(_cdiv(N, P), 8))
    G = _cdiv(N, P * tm)
    N_pad = P * G * tm

    x = logits.astype(jnp.float32)
    tgt = target.astype(jnp.int32)
    if N_pad != N:
        x = jnp.pad(x, ((0, N_pad - N), (0, 0)))
        tgt = jnp.pad(tgt, (0, N_pad - N), constant_values=-1)
    tgt2 = tgt.reshape(N_pad, 1)
    ag = jnp.stack([alpha_vec.astype(jnp.float32),
                    gamma_vec.astype(jnp.float32)], axis=1)    # (C, 2)

    out = pl.pallas_call(
        _focal_loss_kernel_class_lanes,
        out_shape=jax.ShapeDtypeStruct((P, tm, 1), jnp.float32),
        grid_spec=pltpu.PrefetchScalarGridSpec(
            num_scalar_prefetch=0,
            grid=(P, G),
            in_specs=[
                pl.BlockSpec((tm, C), lambda p, g: (p * G + g, 0)),   # logits tile
                pl.BlockSpec((tm, 1), lambda p, g: (p * G + g, 0)),   # target tile
                pl.BlockSpec((C, 2), lambda p, g: (0, 0)),            # [alpha|gamma]
            ],
            out_specs=pl.BlockSpec((1, tm, 1), lambda p, g: (p, 0, 0)),
        ),
        compiler_params=pltpu.CompilerParams(
            dimension_semantics=("parallel", "arbitrary"),
            vmem_limit_bytes=_VMEM_LIMIT_BYTES),
    )(x, tgt2, ag)
    return jnp.sum(out) / N


def focal_loss_pallas(logits, target, alpha_vec, gamma_vec, *, num_parallel=2):
    """Scalar focal loss = mean over samples. logits: (N, C), target: (N,) int."""
    _, C = logits.shape
    if C < 128:
        return _focal_loss_lane_dense(logits, target, alpha_vec, gamma_vec,
                                      num_parallel=num_parallel)
    return _focal_loss_class_lanes(logits, target, alpha_vec, gamma_vec,
                                   num_parallel=num_parallel)


class FocalLossPallas:
    """JAX mirror of the PyTorch FocalLoss module (forward only)."""

    def __init__(self, num_classes, init_alpha, init_gamma, learnable_gamma=False):
        self.num_classes = num_classes
        self.learnable_gamma = learnable_gamma
        init_alpha = jnp.asarray(init_alpha, jnp.float32)
        init_gamma = jnp.asarray(init_gamma, jnp.float32)
        self.log_alpha = jnp.log(init_alpha + 1e-06)
        self.log_gamma = jnp.log(init_gamma)

    def forward(self, logits, target):
        alpha = jnp.exp(self.log_alpha)
        # Faithful to the PyTorch code: when gamma is NOT learnable, the raw
        # log_gamma (not exp(log_gamma)) is used as the per-class exponent.
        # (Likely an upstream quirk; kept to preserve forward semantics.)
        gamma = jnp.exp(self.log_gamma) if self.learnable_gamma else self.log_gamma
        return focal_loss_pallas(logits, target, alpha, gamma)


def _focal_loss_ref(logits, target, alpha_vec, gamma_vec):
    """Pure-JAX reference for verification."""
    lse = jax.nn.logsumexp(logits, axis=-1)
    x_t = jnp.take_along_axis(logits, target[:, None], axis=-1)[:, 0]
    ce = lse - x_t
    pt = jnp.exp(-ce)
    a_t = alpha_vec[target]
    g_t = gamma_vec[target]
    return jnp.mean(a_t * jnp.power(1.0 - pt, g_t) * ce)


if __name__ == "__main__":
    key = jax.random.PRNGKey(0)
    k1, k2, k3, k4 = jax.random.split(key, 4)

    # Tolerances are slightly loose because of pl.reciprocal(approx=True) in pt.
    RTOL, ATOL = 5e-3, 5e-4

    # --- Test 1: small class count (C=8) -> lane-dense transposed path ------
    N1, C1 = 128, 8
    logits1 = jax.random.normal(k1, (N1, C1), dtype=jnp.float32) * 2.0
    target1 = jax.random.randint(k2, (N1,), 0, C1, dtype=jnp.int32)
    init_alpha1 = jnp.linspace(0.25, 1.0, C1, dtype=jnp.float32)
    init_gamma1 = jnp.full((C1,), 2.0, dtype=jnp.float32)
    mod1 = FocalLossPallas(C1, init_alpha1, init_gamma1, learnable_gamma=True)
    loss1 = mod1.forward(logits1, target1)
    jax.block_until_ready(loss1)
    ref1 = _focal_loss_ref(logits1, target1,
                           jnp.exp(mod1.log_alpha), jnp.exp(mod1.log_gamma))
    assert jnp.allclose(loss1, ref1, rtol=RTOL, atol=ATOL), (loss1, ref1)

    # --- Test 2: C=128 -> class-on-lanes path (MXU alpha/gamma gather) ------
    N2, C2 = 512, 128
    logits2 = jax.random.normal(k3, (N2, C2), dtype=jnp.float32) * 2.0
    target2 = jax.random.randint(k4, (N2,), 0, C2, dtype=jnp.int32)
    init_alpha2 = jnp.linspace(0.25, 1.0, C2, dtype=jnp.float32)
    init_gamma2 = jnp.full((C2,), 2.0, dtype=jnp.float32)
    mod2 = FocalLossPallas(C2, init_alpha2, init_gamma2, learnable_gamma=False)
    loss2 = mod2.forward(logits2, target2)
    jax.block_until_ready(loss2)
    ref2 = _focal_loss_ref(logits2, target2,
                           jnp.exp(mod2.log_alpha), mod2.log_gamma)  # raw log_gamma path
    assert jnp.allclose(loss2, ref2, rtol=RTOL, atol=ATOL), (loss2, ref2)

    print("KERNEL_OK")
</pallas_src>

<mosaic_0001>
module attributes {stable_mosaic.version = 11 : i64} {
  func.func @_focal_loss_kernel_lane_dense(%arg0: i32, %arg1: i32, %arg2: memref<8x128xf32, #tpu.memory_space<vmem>>, %arg3: memref<1x128xi32, #tpu.memory_space<vmem>>, %arg4: memref<8x1xf32, #tpu.memory_space<vmem>>, %arg5: memref<8x1xf32, #tpu.memory_space<vmem>>, %arg6: memref<1x1x128xf32, #tpu.memory_space<vmem>>) attributes {dimension_semantics = [#tpu.dimension_semantics<parallel>, #tpu.dimension_semantics<arbitrary>], iteration_bounds = array<i64: 2, 1>, scalar_prefetch = 0 : i64, scratch_operands = 0 : i64, tpu.core_type = #tpu.core_type<tc>, window_params = [{transform_indices = @transform_0, window_bounds = array<i64: 8, 128>}, {transform_indices = @transform_1, window_bounds = array<i64: 1, 128>}, {pipeline_mode = #tpu.pipeline_mode<synchronous>, transform_indices = @transform_2, window_bounds = array<i64: 8, 1>}, {pipeline_mode = #tpu.pipeline_mode<synchronous>, transform_indices = @transform_3, window_bounds = array<i64: 8, 1>}, {transform_indices = @transform_4, window_bounds = array<i64: 1, 1, 128>}]} {
    %c0_i32 = arith.constant 0 : i32
    %0 = arith.cmpi eq, %arg1, %c0_i32 : i32
    %1 = arith.extui %0 : i1 to i32
    %c0_i32_0 = arith.constant 0 : i32
    %2 = arith.cmpi ne, %1, %c0_i32_0 : i32
    scf.if %2 {
      %cst_23 = arith.constant 0.000000e+00 : f32
      %52 = vector.broadcast %cst_23 : f32 to vector<1x1x128xf32>
      %c0_24 = arith.constant 0 : index
      %c0_25 = arith.constant 0 : index
      %c0_26 = arith.constant 0 : index
      %53 = vector.load %arg6[%c0_24, %c0_25, %c0_26] : memref<1x1x128xf32, #tpu.memory_space<vmem>>, vector<1x1x128xf32>
      tpu.vector_store %arg6[%c0_24, %c0_25, %c0_26], %52 {strides = array<i32>} : memref<1x1x128xf32, #tpu.memory_space<vmem>>, vector<1x1x128xf32>,
    } else {
    }
    %c0 = arith.constant 0 : index
    %c0_1 = arith.constant 0 : index
    %3 = vector.load %arg2[%c0, %c0_1] : memref<8x128xf32, #tpu.memory_space<vmem>>, vector<8x128xf32>
    %c0_2 = arith.constant 0 : index
    %c0_3 = arith.constant 0 : index
    %4 = vector.load %arg3[%c0_2, %c0_3] : memref<1x128xi32, #tpu.memory_space<vmem>>, vector<1x128xi32>
    %cst = arith.constant dense<0xFF800000> : vector<128xf32>
    %5 = vector.multi_reduction <maximumf>, %3, %cst [0] : vector<8x128xf32> to vector<128xf32>
    %6 = vector.shape_cast %5 : vector<128xf32> to vector<1x128xf32>
    %7 = vector.broadcast %6 : vector<1x128xf32> to vector<8x128xf32>
    %8 = arith.subf %3, %7 : vector<8x128xf32>
    %9 = math.exp %8 : vector<8x128xf32>
    %cst_4 = arith.constant dense<0.000000e+00> : vector<128xf32>
    %10 = vector.multi_reduction <add>, %9, %cst_4 [0] : vector<8x128xf32> to vector<128xf32>
    %11 = vector.shape_cast %10 : vector<128xf32> to vector<1x128xf32>
    %12 = tpu.iota {dimensions = array<i32: 0>} : vector<8x128xi32>
    %13 = vector.broadcast %4 : vector<1x128xi32> to vector<8x128xi32>
    %14 = arith.cmpi eq, %12, %13 : vector<8x128xi32>
    %15 = arith.extui %14 : vector<8x128xi1> to vector<8x128xi32>
    %16 = arith.sitofp %15 : vector<8x128xi32> to vector<8x128xf32>
    %17 = arith.mulf %16, %9 : vector<8x128xf32>
    %cst_5 = arith.constant dense<0.000000e+00> : vector<128xf32>
    %18 = vector.multi_reduction <add>, %17, %cst_5 [0] : vector<8x128xf32> to vector<128xf32>
    %19 = vector.shape_cast %18 : vector<128xf32> to vector<1x128xf32>
    %20 = arith.mulf %16, %8 : vector<8x128xf32>
    %cst_6 = arith.constant dense<0.000000e+00> : vector<128xf32>
    %21 = vector.multi_reduction <add>, %20, %cst_6 [0] : vector<8x128xf32> to vector<128xf32>
    %22 = vector.shape_cast %21 : vector<128xf32> to vector<1x128xf32>
    %23 = math.log %11 : vector<1x128xf32>
    %24 = arith.subf %23, %22 : vector<1x128xf32>
    %25 = tpu.reciprocal %11 {approx = true} : vector<1x128xf32> -> vector<1x128xf32>
    %26 = arith.mulf %19, %25 : vector<1x128xf32>
    %c0_7 = arith.constant 0 : index
    %c0_8 = arith.constant 0 : index
    %27 = vector.load %arg4[%c0_7, %c0_8] : memref<8x1xf32, #tpu.memory_space<vmem>>, vector<8x1xf32>
    %c0_9 = arith.constant 0 : index
    %c0_10 = arith.constant 0 : index
    %28 = vector.load %arg5[%c0_9, %c0_10] : memref<8x1xf32, #tpu.memory_space<vmem>>, vector<8x1xf32>
    %29 = vector.broadcast %27 : vector<8x1xf32> to vector<8x128xf32>
    %30 = arith.mulf %16, %29 : vector<8x128xf32>
    %cst_11 = arith.constant dense<0.000000e+00> : vector<128xf32>
    %31 = vector.multi_reduction <add>, %30, %cst_11 [0] : vector<8x128xf32> to vector<128xf32>
    %32 = vector.shape_cast %31 : vector<128xf32> to vector<1x128xf32>
    %33 = vector.broadcast %28 : vector<8x1xf32> to vector<8x128xf32>
    %34 = arith.mulf %16, %33 : vector<8x128xf32>
    %cst_12 = arith.constant dense<0.000000e+00> : vector<128xf32>
    %35 = vector.multi_reduction <add>, %34, %cst_12 [0] : vector<8x128xf32> to vector<128xf32>
    %36 = vector.shape_cast %35 : vector<128xf32> to vector<1x128xf32>
    %cst_13 = arith.constant 1.000000e+00 : f32
    %37 = vector.broadcast %cst_13 : f32 to vector<1x128xf32>
    %38 = arith.subf %37, %26 : vector<1x128xf32>
    %cst_14 = arith.constant 9.99999996E-13 : f32
    %39 = vector.broadcast %cst_14 : f32 to vector<1x128xf32>
    %40 = arith.maximumf %38, %39 : vector<1x128xf32>
    %41 = math.powf %40, %36 : vector<1x128xf32>
    %42 = arith.mulf %32, %41 : vector<1x128xf32>
    %43 = arith.mulf %42, %24 : vector<1x128xf32>
    %c0_i32_15 = arith.constant 0 : i32
    %44 = vector.broadcast %c0_i32_15 : i32 to vector<1x128xi32>
    %45 = arith.cmpi sge, %4, %44 : vector<1x128xi32>
    %cst_16 = arith.constant 0.000000e+00 : f32
    %46 = vector.broadcast %cst_16 : f32 to vector<1x128xf32>
    %47 = arith.select %45, %43, %46 : vector<1x128xi1>, vector<1x128xf32>
    %c0_17 = arith.constant 0 : index
    %c0_18 = arith.constant 0 : index
    %c0_19 = arith.constant 0 : index
    %48 = vector.load %arg6[%c0_17, %c0_18, %c0_19] : memref<1x1x128xf32, #tpu.memory_space<vmem>>, vector<1x1x128xf32>
    %49 = vector.shape_cast %47 : vector<1x128xf32> to vector<1x1x128xf32>
    %50 = arith.addf %48, %49 : vector<1x1x128xf32>
    %c0_20 = arith.constant 0 : index
    %c0_21 = arith.constant 0 : index
    %c0_22 = arith.constant 0 : index
    %51 = vector.load %arg6[%c0_20, %c0_21, %c0_22] : memref<1x1x128xf32, #tpu.memory_space<vmem>>, vector<1x1x128xf32>
    tpu.vector_store %arg6[%c0_20, %c0_21, %c0_22], %50 {strides = array<i32>} : memref<1x1x128xf32, #tpu.memory_space<vmem>>, vector<1x1x128xf32>,
    return
  }
  func.func @transform_0(%arg0: i32, %arg1: i32) -> (i32, i32) {
    %c1_i32 = arith.constant 1 : i32
    %0 = arith.muli %arg0, %c1_i32 : i32
    %1 = arith.addi %0, %arg1 : i32
    %c0_i32 = arith.constant 0 : i32
    %c0_i32_0 = arith.constant 0 : i32
    return %c0_i32, %1 : i32, i32
  }
  func.func @transform_1(%arg0: i32, %arg1: i32) -> (i32, i32) {
    %c1_i32 = arith.constant 1 : i32
    %0 = arith.muli %arg0, %c1_i32 : i32
    %1 = arith.addi %0, %arg1 : i32
    %c0_i32 = arith.constant 0 : i32
    %c0_i32_0 = arith.constant 0 : i32
    return %c0_i32, %1 : i32, i32
  }
  func.func @transform_2(%arg0: i32, %arg1: i32) -> (i32, i32) {
    %c0_i32 = arith.constant 0 : i32
    %c0_i32_0 = arith.constant 0 : i32
    %c0_i32_1 = arith.constant 0 : i32
    return %c0_i32, %c0_i32_0 : i32, i32
  }
  func.func @transform_3(%arg0: i32, %arg1: i32) -> (i32, i32) {
    %c0_i32 = arith.constant 0 : i32
    %c0_i32_0 = arith.constant 0 : i32
    %c0_i32_1 = arith.constant 0 : i32
    return %c0_i32, %c0_i32_0 : i32, i32
  }
  func.func @transform_4(%arg0: i32, %arg1: i32) -> (i32, i32, i32) {
    %c0_i32 = arith.constant 0 : i32
    %c0_i32_0 = arith.constant 0 : i32
    %c0_i32_1 = arith.constant 0 : i32
    return %arg0, %c0_i32, %c0_i32_0 : i32, i32, i32
  }
}

</mosaic_0001>

<llo_original>
// kernel: tpu_custom_call.1
$region0: #{tpu_custom_call.1}
  #allocation0 [shape = 'u32[]', space=smem, size = 0x4, offset = 0x4, fixed_abs, tag = 'smem constant byte address 0x4 - core index']
  #allocation1 [shape = 'u32[144,128]{1,0:T(1,128)}', space=vmem, size = 0x12000, scoped, tag = 'internal scratch']
  %s0 = inlined_call_operand.vmem [shape: f32[8,256], index: 0, kind: input, shape index: {}]
  %s1 = inlined_call_operand.vmem [shape: s32[1,256], index: 1, kind: input, shape index: {}]
  %s2 = inlined_call_operand.vmem [shape: f32[8,1], index: 2, kind: input, shape index: {}]
  %s3 = inlined_call_operand.vmem [shape: f32[8,1], index: 3, kind: input, shape index: {}]
  %s4 = inlined_call_operand.hbm [shape: f32[2,1,128], index: 4, kind: output, shape index: {}]
  %s5 = sld [smem:[#allocation0]]
  $region53: #{tpu_custom_call.1} parent=0
    _
  %s7 = ssub.s32 1, %s5
  %s8 = scalar_select 0, %s7, %s5
  $region1: #{tpu_custom_call.1} parent=0
    #allocation2 [shape = 'u8[1024]{0}', space=vmem, size = 0x400, scoped, tag = 'output window, operand 0']
    #allocation3 [shape = 's32[2]{0}', space=sflag, size = 0x8, scoped, tag = 'scoped memory for tpu_custom_call.1']
    %9 = vsyncpa [#allocation3], 0
    %s10 = scalar_lea.sflag [#allocation3], 1
    %11 = vsyncpa %s10, 0
    loop: start=0, step=1, limit=4
    $region2: #{tpu_custom_call.1} parent=1 // loop_pre_header
      _
    $region3: #{tpu_custom_call.1} parent=1 // loop_header
      %s13 = sphi 0, %s17
      %p14 = scmp.ge.s32.totalorder %s13, 4
      %s20 = sphi 0, %s32
      %s21 = sphi 0, %s28
      %s22 = sphi 0, %s20
      %s23 = sphi 0, %s21
      %s24 = sphi 0, %s22
      %s25 = sphi 0, %s23
      %s37 = sphi 0, %s39
      %s40 = sphi 0, %s37
      %s41 = sphi 0, %s40
      %s57 = sphi 0, %s41
      %s65 = sphi 0, %s67
      %s68 = sphi 0, %s65
      %s69 = sphi 0, %s68
      %s85 = sphi 0, %s69
      %s89 = sphi 0, %s89
      %s91 = sphi 0, %s89
      %s92 = sphi 0, %s91
      %s106 = sphi 0, %s92
      %s110 = sphi 0, %s110
      %s112 = sphi 0, %s110
      %s113 = sphi 0, %s112
      %s127 = sphi 0, %s113
      %s133 = sphi 0, %s135
      %s136 = sphi 0, %s133
      %s137 = sphi 0, %s136
      %s153 = sphi 0, %s137
    $region4: #{tpu_custom_call.1} parent=1 // loop_header_branch
      %16 = sbr.rel (%p14) target = $region8
    $region5: #{tpu_custom_call.1} parent=1 // loop_body
      %s18 = ssub.s32 %s13, 1
      %s19 = ssub.s32 %s13, 2
      %s26 = sadd.s32 1, %s21
      %p27 = scmp.ge.s32.totalorder %s26, 1
      %s28 = scalar_select %p27, 0, %s26
      %s29 = sadd.s32 1, %s20
      %s30 = scalar_select %p27, %s29, %s20
      %p31 = scmp.ge.s32.totalorder %s30, 2
      %s32 = scalar_select %p31, 0, %s30
      %s33 = sadd.s32 %s20, %s21
      %s34 = sadd.s32 %s32, %s28
      %s35 = ssub.s32 %s33, %s34
      %p36 = scmp.eq.s32.totalorder %s35, 0
      %s38 = sadd.s32 %s37, 1
      %s39 = scalar_select %p36, %s37, %s38
      %p42 = pneg %p36
      %p43 = scmp.eq.s32.totalorder %s13, 1
      %p44 = por %p42, %p43
      %p45 = scmp.ne.s32.totalorder %s37, %s40
      %p46 = scmp.eq.s32.totalorder %s13, 0
      %p47 = por %p45, %p46
      %p48 = scmp.ne.s32.totalorder %s37, %s40
      %p49 = scmp.eq.s32.totalorder %s18, 1
      %p50 = por %p48, %p49
      %p51 = scmp.ne.s32.totalorder %s40, %s41
      %p52 = scmp.eq.s32.totalorder %s18, 0
      %p53 = por %p51, %p52
      %p54 = scmp.ne.s32.totalorder %s40, %s41
      %p55 = scmp.eq.s32.totalorder %s19, 1
      %p56 = por %p54, %p55
      %p58 = scmp.ne.s32.totalorder %s41, %s57
      %p59 = scmp.eq.s32.totalorder %s19, 0
      %p60 = por %p58, %p59
      %s61 = sadd.s32 %s20, %s21
      %s62 = sadd.s32 %s32, %s28
      %s63 = ssub.s32 %s61, %s62
      %p64 = scmp.eq.s32.totalorder %s63, 0
      %s66 = sadd.s32 %s65, 1
      %s67 = scalar_select %p64, %s65, %s66
      %p70 = pneg %p64
      %p71 = scmp.eq.s32.totalorder %s13, 1
      %p72 = por %p70, %p71
      %p73 = scmp.ne.s32.totalorder %s65, %s68
      %p74 = scmp.eq.s32.totalorder %s13, 0
      %p75 = por %p73, %p74
      %p76 = scmp.ne.s32.totalorder %s65, %s68
      %p77 = scmp.eq.s32.totalorder %s18, 1
      %p78 = por %p76, %p77
      %p79 = scmp.ne.s32.totalorder %s68, %s69
      %p80 = scmp.eq.s32.totalorder %s18, 0
      %p81 = por %p79, %p80
      %p82 = scmp.ne.s32.totalorder %s68, %s69
      %p83 = scmp.eq.s32.totalorder %s19, 1
      %p84 = por %p82, %p83
      %p86 = scmp.ne.s32.totalorder %s69, %s85
      %p87 = scmp.eq.s32.totalorder %s19, 0
      %p88 = por %p86, %p87
      %s90 = sadd.s32 %s89, 1
      %p93 = scmp.eq.s32.totalorder %s13, 1
      %p94 = scmp.ne.s32.totalorder %s89, %s91
      %p95 = scmp.eq.s32.totalorder %s13, 0
      %p96 = por %p94, %p95
      %p97 = scmp.ne.s32.totalorder %s89, %s91
      %p98 = scmp.eq.s32.totalorder %s18, 1
      %p99 = por %p97, %p98
      %p100 = scmp.ne.s32.totalorder %s91, %s92
      %p101 = scmp.eq.s32.totalorder %s18, 0
      %p102 = por %p100, %p101
      %p103 = scmp.ne.s32.totalorder %s91, %s92
      %p104 = scmp.eq.s32.totalorder %s19, 1
      %p105 = por %p103, %p104
      %p107 = scmp.ne.s32.totalorder %s92, %s106
      %p108 = scmp.eq.s32.totalorder %s19, 0
      %p109 = por %p107, %p108
      %s111 = sadd.s32 %s110, 1
      %p114 = scmp.eq.s32.totalorder %s13, 1
      %p115 = scmp.ne.s32.totalorder %s110, %s112
      %p116 = scmp.eq.s32.totalorder %s13, 0
      %p117 = por %p115, %p116
      %p118 = scmp.ne.s32.totalorder %s110, %s112
      %p119 = scmp.eq.s32.totalorder %s18, 1
      %p120 = por %p118, %p119
      %p121 = scmp.ne.s32.totalorder %s112, %s113
      %p122 = scmp.eq.s32.totalorder %s18, 0
      %p123 = por %p121, %p122
      %p124 = scmp.ne.s32.totalorder %s112, %s113
      %p125 = scmp.eq.s32.totalorder %s19, 1
      %p126 = por %p124, %p125
      %p128 = scmp.ne.s32.totalorder %s113, %s127
      %p129 = scmp.eq.s32.totalorder %s19, 0
      %p130 = por %p128, %p129
      %s131 = ssub.s32 %s20, %s32
      %p132 = scmp.eq.s32.totalorder %s131, 0
      %s134 = sadd.s32 %s133, 1
      %s135 = scalar_select %p132, %s133, %s134
      %p138 = pneg %p132
      %p139 = scmp.eq.s32.totalorder %s13, 1
      %p140 = por %p138, %p139
      %p141 = scmp.ne.s32.totalorder %s133, %s136
      %p142 = scmp.eq.s32.totalorder %s13, 0
      %p143 = por %p141, %p142
      %p144 = scmp.ne.s32.totalorder %s133, %s136
      %p145 = scmp.eq.s32.totalorder %s18, 1
      %p146 = por %p144, %p145
      %p147 = scmp.ne.s32.totalorder %s136, %s137
      %p148 = scmp.eq.s32.totalorder %s18, 0
      %p149 = por %p147, %p148
      %p150 = scmp.ne.s32.totalorder %s136, %s137
      %p151 = scmp.eq.s32.totalorder %s19, 1
      %p152 = por %p150, %p151
      %p154 = scmp.ne.s32.totalorder %s137, %s153
      %p155 = scmp.eq.s32.totalorder %s19, 0
      %p156 = por %p154, %p155
      %p157 = scmp.le.s32.totalorder 1, %s13
      %p158 = scmp.lt.s32.totalorder %s13, 3
      %p159 = pnand %p157, %p158
      %p160 = pneg %p159
      // Predicated region
      $region9: #{tpu_custom_call.1} parent=5 // pred_check
        _
      $region10: #{tpu_custom_call.1} parent=5 // pred_check_branch
        %162 = sbr.rel (%p159) target = $region12
      $region11: #{tpu_custom_call.1} parent=5 // pred_region
        %s163 = ssub.s32 %s13, 1
        // Predicated region
        $region13: #{tpu_custom_call.1} parent=11 // pred_check
          %p164 = pneg %p102
        $region14: #{tpu_custom_call.1} parent=11 // pred_check_branch
          %166 = sbr.rel (%p164) target = $region16
        $region15: #{tpu_custom_call.1} parent=11 // pred_region
          _
        $region16: #{tpu_custom_call.1} parent=11 // pred_fallthru
          _
        // Predicated region
        $region17: #{tpu_custom_call.1} parent=11 // pred_check
          %p167 = pneg %p123
        $region18: #{tpu_custom_call.1} parent=11 // pred_check_branch
          %169 = sbr.rel (%p167) target = $region20
        $region19: #{tpu_custom_call.1} parent=11 // pred_region
          _
        $region20: #{tpu_custom_call.1} parent=11 // pred_fallthru
          _
      $region12: #{tpu_custom_call.1} parent=5 // pred_fallthru
        _
      %p170 = scmp.lt.s32.totalorder %s13, 2
      // Predicated region
      $region21: #{tpu_custom_call.1} parent=5 // pred_check
        %p171 = pneg %p170
      $region22: #{tpu_custom_call.1} parent=5 // pred_check_branch
        %173 = sbr.rel (%p171) target = $region24
      $region23: #{tpu_custom_call.1} parent=5 // pred_region
        // Predicated region
        $region25: #{tpu_custom_call.1} parent=23 // pred_check
          %p174 = pneg %p47
        $region26: #{tpu_custom_call.1} parent=23 // pred_check_branch
          %176 = sbr.rel (%p174) target = $region28
        $region27: #{tpu_custom_call.1} parent=23 // pred_region
          %s177 = sadd.s32 %s20, %s21
          %p178 = scmp.lt.s32.totalorder %s177, 1
          %s179 = scalar_select %p178, %s177, 1
          %s180 = smul.addr %s179, 8
          %s181 = scalar_lea.vmem %s0, %s180
          %s182 = sadd.s32 %s20, %s21
        $region28: #{tpu_custom_call.1} parent=23 // pred_fallthru
          _
        // Predicated region
        $region29: #{tpu_custom_call.1} parent=23 // pred_check
          %p183 = pneg %p75
        $region30: #{tpu_custom_call.1} parent=23 // pred_check_branch
          %185 = sbr.rel (%p183) target = $region32
        $region31: #{tpu_custom_call.1} parent=23 // pred_region
          %s186 = sadd.s32 %s20, %s21
          %p187 = scmp.lt.s32.totalorder %s186, 1
          %s188 = scalar_select %p187, %s186, 1
          %s189 = scalar_lea.vmem %s1, %s188
          %s190 = sadd.s32 %s20, %s21
        $region32: #{tpu_custom_call.1} parent=23 // pred_fallthru
          _
      $region24: #{tpu_custom_call.1} parent=5 // pred_fallthru
        _
      %p191 = scmp.le.s32.totalorder 1, %s13
      %p192 = scmp.lt.s32.totalorder %s13, 3
      %p193 = pnand %p191, %p192
      %p194 = pneg %p193
      // Predicated region
      $region33: #{tpu_custom_call.1} parent=5 // pred_check
        _
      $region34: #{tpu_custom_call.1} parent=5 // pred_check_branch
        %196 = sbr.rel (%p193) target = $region36
      $region35: #{tpu_custom_call.1} parent=5 // pred_region
        %s197 = ssub.s32 %s13, 1
        %s198 = sadd.s32 %s22, %s23
        %p199 = scmp.lt.s32.totalorder %s198, 1
        %s200 = scalar_select %p199, %s198, 1
        %s201 = smul.addr %s200, 8
        %s202 = scalar_lea.vmem %s0, %s201
        %p203 = pneg %p53
        %p204 = pneg %p50
        %s205 = sadd.s32 %s22, %s23
        %p206 = scmp.lt.s32.totalorder %s205, 1
        %s207 = scalar_select %p206, %s205, 1
        %s208 = scalar_lea.vmem %s1, %s207
        %p209 = pneg %p81
        %p210 = pneg %p78
        %p211 = pneg %p102
        %p212 = pneg %p99
        %p213 = pneg %p123
        %p214 = pneg %p120
        %p215 = pneg %p149
        %p216 = pneg %p146
        %s217 = sand.u32 %s136, 1
        %s218 = scalar_lea.sflag [#allocation3], %s217
        %s219 = sand.u32 %s136, 1
        %s220 = scalar_lea.vmem [#allocation2], %s219
        %s221 = sadd.s32 %s22, %s23
        %p222 = scmp.lt.s32.totalorder %s221, 1
        %s223 = scalar_select %p222, %s221, 1
        %s224 = smul.addr %s223, 8
        %s225 = scalar_lea.vmem %s0, %s224
        %s226 = sadd.s32 %s22, %s23
        %s227 = sadd.s32 %s22, %s23
        %p228 = scmp.lt.s32.totalorder %s227, 1
        %s229 = scalar_select %p228, %s227, 1
        %s230 = scalar_lea.vmem %s1, %s229
        %s231 = sadd.s32 %s22, %s23
        %p232 = scmp.eq.s32.totalorder %s23, 0
        // Predicated region
        $region37: #{tpu_custom_call.1} parent=35 // pred_check
          %p233 = pneg %p232
        $region38: #{tpu_custom_call.1} parent=35 // pred_check_branch
          %235 = sbr.rel (%p233) target = $region40
        $region39: #{tpu_custom_call.1} parent=35 // pred_region
          %236 = vst [vmem:[%s220] sm:$0x1] 0.0
        $region40: #{tpu_custom_call.1} parent=35 // pred_fallthru
          _
        %v237 = vld [vmem:[%s225] sm:$0xff]
        %v238 = vld [vmem:[%s230] sm:$0x1]
        %v239 = vrot.slane %v237, 4
        %v240 = vmax.f32 %v237, %v239
        %v241 = vrot.slane %v240, 2
        %v242 = vmax.f32 %v240, %v241
        %v243 = vrot.slane %v242, 1
        %v244 = vmax.f32 %v242, %v243
        %v245 = vsub.f32 %v237, %v244
        %v246 = vmul.f32 %v245, 1.442695
        %v247 = vpow.pop %v246
        %v248 = vrot.slane %v247, 4
        %v249 = vadd.f32 %v247, %v248
        %v250 = vrot.slane %v249, 2
        %v251 = vadd.f32 %v249, %v250
        %v252 = vrot.slane %v251, 1
        %v253 = vadd.f32 %v251, %v252
        %v254 = vlaneseq
        %v255 = vshrl.u32 %v254, 7
        %v256 = vlaneseq
        %v257 = vshrl.u32 %v256, 7
        %v258 = vsub.s32 0, %v257
        %v259 = vrot.slane %v238, %v258
        %vm260 = vcmp.eq.s32.totalorder %v255, %v259
        %v261 = vsel %vm260, 1, 0
        %v262 = vcvt.s32.f32 %v261
        %v263 = vmul.f32 %v262, %v247
        %v264 = vrot.slane %v263, 4
        %v265 = vadd.f32 %v263, %v264
        %v266 = vrot.slane %v265, 2
        %v267 = vadd.f32 %v265, %v266
        %v268 = vrot.slane %v267, 1
        %v269 = vadd.f32 %v267, %v268
        %v270 = vmul.f32 %v262, %v245
        %v271 = vrot.slane %v270, 4
        %v272 = vadd.f32 %v270, %v271
        %v273 = vrot.slane %v272, 2
        %v274 = vadd.f32 %v272, %v273
        %v275 = vrot.slane %v274, 1
        %v276 = vadd.f32 %v274, %v275
        %v277 = vlog2.pop %v253
        %v278 = vmul.f32 %v277, 0.6931472
        %v279 = vsub.f32 %v278, %v276
        %v280 = vrcp.pop %v253
        %v281 = vmul.f32 %v269, %v280
        %v282 = vld [vmem:[%s2] sm:$0xff]
        %v283 = vld [vmem:[%s3] sm:$0xff]
        %285 = vset.pattern.permute.xlu0 0
        %286 = vperm.xlu0 %285, %v282
        %v287 = vpop.permute.xlu0 %286
        %v289 = vmul.f32 %v262, %v287
        %v290 = vrot.slane %v289, 4
        %v291 = vadd.f32 %v289, %v290
        %v292 = vrot.slane %v291, 2
        %v293 = vadd.f32 %v291, %v292
        %v294 = vrot.slane %v293, 1
        %v295 = vadd.f32 %v293, %v294
        %297 = vset.pattern.permute.xlu0 0
        %298 = vperm.xlu0 %297, %v283
        %v299 = vpop.permute.xlu0 %298
        %v301 = vmul.f32 %v262, %v299
        %v302 = vrot.slane %v301, 4
        %v303 = vadd.f32 %v301, %v302
        %v304 = vrot.slane %v303, 2
        %v305 = vadd.f32 %v303, %v304
        %v306 = vrot.slane %v305, 1
        %v307 = vadd.f32 %v305, %v306
        %v308 = vsub.f32 1.0, %v281
        %v309 = vmax.f32 %v308, 1e-12
        %v310 = vpow.f32 %v309, %v307
        %v311 = vmul.f32 %v295, %v310
        %v312 = vmul.f32 %v311, %v279
        %vm313 = vcmp.ge.s32.totalorder %v238, 0
        %v314 = vsel %vm313, %v312, 0.0
        %v315 = vld [vmem:[%s220] sm:$0x1]
        %v316 = vadd.f32 %v315, %v314
        %317 = vst [vmem:[%s220] sm:$0x1] %v316
        %s318 = sand.u32 %s136, 1
        %s319 = scalar_lea.sflag [#allocation3], %s318
        %s320 = sand.u32 %s136, 1
        %s321 = scalar_lea.vmem [#allocation2], %s320
        // Predicated region
        $region41: #{tpu_custom_call.1} parent=35 // pred_check
          %p322 = pneg %p146
        $region42: #{tpu_custom_call.1} parent=35 // pred_check_branch
          %324 = sbr.rel (%p322) target = $region44
        $region43: #{tpu_custom_call.1} parent=35 // pred_region
          %s326 = ssub.s32 16, 16
          %327 = vsyncadd %s319, %s326
          %s328 = smul.addr %s22, 16
          %s329 = scalar_lea.hbm %s4, %s328
          %s331 = sshll.u32 %s321, 4
          %s332 = int_to_ptr.vmem [resolvable:$true] %s331
          %334 = dma.vmem_to_hbm [thread:$0]  %s332, 16, %s329, %s319
        $region44: #{tpu_custom_call.1} parent=35 // pred_fallthru
          _
      $region36: #{tpu_custom_call.1} parent=5 // pred_fallthru
        _
      %p335 = scmp.le.s32.totalorder 2, %s13
      // Predicated region
      $region45: #{tpu_custom_call.1} parent=5 // pred_check
        %p336 = pneg %p335
      $region46: #{tpu_custom_call.1} parent=5 // pred_check_branch
        %338 = sbr.rel (%p336) target = $region48
      $region47: #{tpu_custom_call.1} parent=5 // pred_region
        %s339 = ssub.s32 %s13, 2
        // Predicated region
        $region49: #{tpu_custom_call.1} parent=47 // pred_check
          %p340 = pneg %p152
        $region50: #{tpu_custom_call.1} parent=47 // pred_check_branch
          %342 = sbr.rel (%p340) target = $region52
        $region51: #{tpu_custom_call.1} parent=47 // pred_region
          %s343 = sand.u32 %s137, 1
          %s344 = scalar_lea.sflag [#allocation3], %s343
          %s345 = sand.u32 %s137, 1
          %s346 = scalar_lea.vmem [#allocation2], %s345
          %347 = dma.done %s344, 16
        $region52: #{tpu_custom_call.1} parent=47 // pred_fallthru
          _
      $region48: #{tpu_custom_call.1} parent=5 // pred_fallthru
        _
    $region6: #{tpu_custom_call.1} parent=1 // loop_footer
      %s17 = sadd.s32 1, %s13
    $region7: #{tpu_custom_call.1} parent=1 // loop_footer_branch
      %12 = sbr.rel target = $region3
    $region8: #{tpu_custom_call.1} parent=1 // loop_exit
      _
    %348 = vsyncpa [#allocation3], 1
    %s349 = scalar_lea.sflag [#allocation3], 1
    %350 = vsyncpa %s349, 1

</llo_original>
